<compile_context>
chip_gen: v5e
topology: v5e:2x2
jax: 0.10.0
libtpu: 0.0.40
codegen_flags: <defaults>
</compile_context>

<pallas_src>
import functools

import jax
import jax.numpy as jnp
from jax import lax
from jax.experimental import pallas as pl
from jax.experimental.pallas import tpu as pltpu


def _snconv_kernel(u_ref, x_ref, w_ref, b_ref, o_ref, u_out_ref, *,
                   n_batch, cin, k, w_pad, swp, kkc_pad, neg_slope, eps):
    """Fused spectral-norm + im2col + conv-matmul + bias + LeakyReLU.

    u_ref:     (Cout, 1)        power-iteration vector
    x_ref:     (N, Cin, L)      flat zero-padded input (row stride = w_pad)
    w_ref:     (Cout, KKCp)     raw weight, (kh, kw, cin)-minor order, zero-padded cols
    b_ref:     (Cout, 1)        bias column
    o_ref:     (N, Cout, SWp)   dense stride-1 output over the padded-width grid
    u_out_ref: (Cout, 1)        updated power-iteration vector
    """
    w = w_ref[...]                                              # (Cout, KKCp)
    u = u_ref[...]                                              # (Cout, 1)

    # ---- spectral norm: one power-iteration step, all on the tiny weight tile ----
    v = jnp.sum(w * u, axis=0, keepdims=True)                   # (1, KKCp)  == (W^T u)^T
    v = v / jnp.maximum(jnp.sqrt(jnp.sum(v * v, keepdims=True)), eps)
    wv = jnp.sum(w * v, axis=1, keepdims=True)                  # (Cout, 1)  == W v
    u_new = wv / jnp.maximum(jnp.sqrt(jnp.sum(wv * wv, keepdims=True)), eps)
    sigma = jnp.sum(u_new * wv, keepdims=True)                  # (1, 1)
    u_out_ref[...] = u_new

    # Scale the weight once (8 x KKCp tile), not the (Cout, SWp) accumulator.
    w_sn = w / sigma
    cout = w.shape[0]

    # ---- in-kernel im2col: each tap is a CONTIGUOUS lane slice of the flat input ----
    # col row order = (kh, kw, cin)-major  ==  w_ref's column order.
    taps = []
    for kh in range(k):
        for kw in range(k):
            off = kh * w_pad + kw
            taps.append(x_ref[:, :, pl.ds(off, swp)])           # (N, Cin, SWp)
    pad_rows = kkc_pad - cin * k * k
    if pad_rows > 0:                                            # zero taps -> aligned contraction dim
        taps.append(jnp.zeros((n_batch, pad_rows, swp), dtype=x_ref.dtype))
    col = jnp.concatenate(taps, axis=1)                         # (N, KKCp, SWp)

    # Hoist the bias lane-broadcast out of the batch loop (no CSE in JAX).
    b_full = jnp.broadcast_to(b_ref[...], (cout, swp))

    # Small static batch: unrolled; one (Cout,KKCp)@(KKCp,SWp) MXU dot + dense store each.
    # TODO(synk): for larger N, fold batch into the lane axis (single wider dot) or a
    # grid axis instead of this static unroll (vreg pressure / spills).
    # TODO(synk): at production sizes cast w_sn / col to bf16 (keep f32 accumulation).
    for n in range(n_batch):
        acc = jnp.dot(w_sn, col[n], preferred_element_type=jnp.float32)   # (Cout, SWp)
        y = acc + b_full
        # LeakyReLU; max(y, a*y) is only valid for a <= 1 (a = 0.2 here).
        o_ref[n] = jnp.maximum(y, neg_slope * y).astype(o_ref.dtype)


def _power_iteration(w_mat, u, eps=1e-12):
    """One power-iteration step, as torch.nn.utils.spectral_norm does per forward."""
    v = w_mat.T @ u
    v = v / jnp.maximum(jnp.linalg.norm(v), eps)
    u_new = w_mat @ v
    u_new = u_new / jnp.maximum(jnp.linalg.norm(u_new), eps)
    sigma = u_new @ (w_mat @ v)
    return sigma, u_new


@functools.partial(jax.jit, static_argnames=("stride", "padding", "neg_slope"))
def sn_conv_with_activation(x_nchw, weight_oikk, bias, u,
                            stride=1, padding=1, neg_slope=0.2):
    N, Cin, H, W = x_nchw.shape
    Cout, _, K, _ = weight_oikk.shape

    H_pad, W_pad = H + 2 * padding, W + 2 * padding
    H1 = H_pad - K + 1                         # dense stride-1 output rows
    H_out = (H_pad - K) // stride + 1
    W_out = (W_pad - K) // stride + 1

    SW = H1 * W_pad                            # flat spatial extent (incl. pad columns)
    SWp = ((SW + 127) // 128) * 128            # lane-align -> unmasked matmul & stores
    KKC = Cin * K * K
    KKCp = ((KKC + 7) // 8) * 8                # sublane-align the contraction dim

    # Raw weight in (kh, kw, cin)-minor column order (matches in-kernel tap stacking),
    # zero-padded to KKCp columns. sigma / u_new are invariant to this permutation+pad.
    w_mat = weight_oikk.transpose(0, 2, 3, 1).reshape(Cout, KKC).astype(jnp.float32)
    w_mat = jnp.pad(w_mat, ((0, 0), (0, KKCp - KKC)))

    # Flat zero-padded input slab: every conv tap becomes one contiguous lane slice.
    off_max = (K - 1) * W_pad + (K - 1)
    L = ((off_max + SWp + 127) // 128) * 128
    x_pad = jnp.pad(x_nchw, ((0, 0), (0, 0), (padding, padding), (padding, padding)))
    x_flat = x_pad.reshape(N, Cin, H_pad * W_pad)
    x_flat = jnp.pad(x_flat, ((0, 0), (0, 0), (0, L - H_pad * W_pad)))

    kernel = functools.partial(
        _snconv_kernel, n_batch=N, cin=Cin, k=K, w_pad=W_pad, swp=SWp,
        kkc_pad=KKCp, neg_slope=neg_slope, eps=1e-12)

    out_flat, u_new = pl.pallas_call(
        kernel,
        out_shape=(
            jax.ShapeDtypeStruct((N, Cout, SWp), x_nchw.dtype),
            jax.ShapeDtypeStruct((Cout, 1), jnp.float32),
        ),
        in_specs=[
            pl.BlockSpec(memory_space=pltpu.MemorySpace.VMEM),   # u
            pl.BlockSpec(memory_space=pltpu.MemorySpace.VMEM),   # flat padded input
            pl.BlockSpec(memory_space=pltpu.MemorySpace.VMEM),   # raw weight matrix
            pl.BlockSpec(memory_space=pltpu.MemorySpace.VMEM),   # bias column
        ],
        out_specs=(
            pl.BlockSpec(memory_space=pltpu.MemorySpace.VMEM),
            pl.BlockSpec(memory_space=pltpu.MemorySpace.VMEM),
        ),
    )(u.reshape(Cout, 1).astype(jnp.float32), x_flat, w_mat,
      bias.reshape(Cout, 1).astype(jnp.float32))

    # Channel-first dense output: reshape IS NCHW; just crop the pad columns
    # (and subsample for stride > 1).
    out4 = out_flat[:, :, :SW].reshape(N, Cout, H1, W_pad)
    out = out4[:, :, ::stride, ::stride][:, :, :H_out, :W_out]
    return out, u_new.reshape(Cout)


def _reference(x_nchw, weight_oikk, bias, u, stride=1, padding=1, neg_slope=0.2):
    """Pure-JAX reference (torch spectral_norm + Conv2d + LeakyReLU semantics)."""
    Cout = weight_oikk.shape[0]
    sigma, u_new = _power_iteration(weight_oikk.reshape(Cout, -1), u)
    w_sn = weight_oikk / sigma
    y = lax.conv_general_dilated(
        x_nchw, w_sn,
        window_strides=(stride, stride),
        padding=((padding, padding), (padding, padding)),
        dimension_numbers=("NCHW", "OIHW", "NCHW"))
    y = y + bias[None, :, None, None]
    return jnp.where(y > 0, y, neg_slope * y), u_new


if __name__ == "__main__":
    # Module config: SNConvWithActivation(in_channels=4, out_channels=8,
    #                                     kernel_size=3, stride=1, padding=1)
    N, Cin, H, W = 2, 4, 16, 16
    Cout, K = 8, 3
    stride, padding = 1, 1

    key = jax.random.PRNGKey(0)
    kx, kw, kb, ku = jax.random.split(key, 4)

    x = jax.random.normal(kx, (N, Cin, H, W), dtype=jnp.float32)

    # Kaiming normal init (fan_in mode, gain=sqrt(2)), as in nn.init.kaiming_normal_.
    fan_in = Cin * K * K
    weight = jax.random.normal(kw, (Cout, Cin, K, K), dtype=jnp.float32) * jnp.sqrt(2.0 / fan_in)
    # Conv2d default bias init: U(-1/sqrt(fan_in), 1/sqrt(fan_in)).
    bound = 1.0 / jnp.sqrt(fan_in)
    bias = jax.random.uniform(kb, (Cout,), dtype=jnp.float32, minval=-bound, maxval=bound)
    # Spectral-norm power-iteration vector u (normalized Gaussian, as torch initializes).
    u = jax.random.normal(ku, (Cout,), dtype=jnp.float32)
    u = u / jnp.maximum(jnp.linalg.norm(u), 1e-12)

    out, u_new = sn_conv_with_activation(x, weight, bias, u,
                                         stride=stride, padding=padding, neg_slope=0.2)
    out = jax.block_until_ready(out)

    ref_out, ref_u = _reference(x, weight, bias, u,
                                stride=stride, padding=padding, neg_slope=0.2)
    assert out.shape == (N, Cout, H, W), out.shape
    max_err = float(jnp.max(jnp.abs(out - ref_out)))
    assert jnp.allclose(out, ref_out, atol=1e-4, rtol=1e-4), max_err
    assert jnp.allclose(u_new, ref_u, atol=1e-5, rtol=1e-5), "u_new mismatch"

    print("KERNEL_OK")
</pallas_src>

<mosaic_0001>
module attributes {stable_mosaic.version = 11 : i64} {
  func.func @_snconv_kernel(%arg0: memref<8x1xf32, #tpu.memory_space<vmem>>, %arg1: memref<2x4x512xf32, #tpu.memory_space<vmem>>, %arg2: memref<8x40xf32, #tpu.memory_space<vmem>>, %arg3: memref<8x1xf32, #tpu.memory_space<vmem>>, %arg4: memref<2x8x384xf32, #tpu.memory_space<vmem>>, %arg5: memref<8x1xf32, #tpu.memory_space<vmem>>) attributes {dimension_semantics = [], scalar_prefetch = 0 : i64, scratch_operands = 0 : i64, tpu.core_type = #tpu.core_type<tc>} {
    %c0 = arith.constant 0 : index
    %c0_0 = arith.constant 0 : index
    %0 = vector.load %arg2[%c0, %c0_0] : memref<8x40xf32, #tpu.memory_space<vmem>>, vector<8x40xf32>
    %c0_1 = arith.constant 0 : index
    %c0_2 = arith.constant 0 : index
    %1 = vector.load %arg0[%c0_1, %c0_2] : memref<8x1xf32, #tpu.memory_space<vmem>>, vector<8x1xf32>
    %2 = vector.broadcast %1 : vector<8x1xf32> to vector<8x40xf32>
    %3 = arith.mulf %0, %2 : vector<8x40xf32>
    %cst = arith.constant dense<0.000000e+00> : vector<40xf32>
    %4 = vector.multi_reduction <add>, %3, %cst [0] : vector<8x40xf32> to vector<40xf32>
    %5 = vector.shape_cast %4 : vector<40xf32> to vector<1x40xf32>
    %6 = arith.mulf %5, %5 : vector<1x40xf32>
    %7 = vector.shape_cast %6 : vector<1x40xf32> to vector<1x1x40xf32>
    %cst_3 = arith.constant dense<0.000000e+00> : vector<1xf32>
    %8 = vector.multi_reduction <add>, %7, %cst_3 [1, 2] : vector<1x1x40xf32> to vector<1xf32>
    %9 = vector.shape_cast %8 : vector<1xf32> to vector<1x1x1xf32>
    %10 = vector.extract %9[0, 0, 0] : f32 from vector<1x1x1xf32>
    %11 = vector.broadcast %10 : f32 to vector<1x1xf32>
    %12 = math.sqrt %11 : vector<1x1xf32>
    %cst_4 = arith.constant 9.99999996E-13 : f32
    %13 = vector.broadcast %cst_4 : f32 to vector<1x1xf32>
    %14 = arith.maximumf %12, %13 : vector<1x1xf32>
    %15 = vector.broadcast %14 : vector<1x1xf32> to vector<1x40xf32>
    %16 = arith.divf %5, %15 : vector<1x40xf32>
    %17 = vector.broadcast %16 : vector<1x40xf32> to vector<8x40xf32>
    %18 = arith.mulf %0, %17 : vector<8x40xf32>
    %cst_5 = arith.constant dense<0.000000e+00> : vector<8xf32>
    %19 = vector.multi_reduction <add>, %18, %cst_5 [1] : vector<8x40xf32> to vector<8xf32>
    %20 = vector.shape_cast %19 : vector<8xf32> to vector<8x1xf32>
    %21 = arith.mulf %20, %20 : vector<8x1xf32>
    %22 = vector.shape_cast %21 : vector<8x1xf32> to vector<1x8x1xf32>
    %cst_6 = arith.constant dense<0.000000e+00> : vector<1xf32>
    %23 = vector.multi_reduction <add>, %22, %cst_6 [1, 2] : vector<1x8x1xf32> to vector<1xf32>
    %24 = vector.shape_cast %23 : vector<1xf32> to vector<1x1x1xf32>
    %25 = vector.extract %24[0, 0, 0] : f32 from vector<1x1x1xf32>
    %26 = vector.broadcast %25 : f32 to vector<1x1xf32>
    %27 = math.sqrt %26 : vector<1x1xf32>
    %cst_7 = arith.constant 9.99999996E-13 : f32
    %28 = vector.broadcast %cst_7 : f32 to vector<1x1xf32>
    %29 = arith.maximumf %27, %28 : vector<1x1xf32>
    %30 = vector.broadcast %29 : vector<1x1xf32> to vector<8x1xf32>
    %31 = arith.divf %20, %30 : vector<8x1xf32>
    %32 = arith.mulf %31, %20 : vector<8x1xf32>
    %33 = vector.shape_cast %32 : vector<8x1xf32> to vector<1x8x1xf32>
    %cst_8 = arith.constant dense<0.000000e+00> : vector<1xf32>
    %34 = vector.multi_reduction <add>, %33, %cst_8 [1, 2] : vector<1x8x1xf32> to vector<1xf32>
    %35 = vector.shape_cast %34 : vector<1xf32> to vector<1x1x1xf32>
    %36 = vector.extract %35[0, 0, 0] : f32 from vector<1x1x1xf32>
    %37 = vector.broadcast %36 : f32 to vector<1x1xf32>
    %c0_9 = arith.constant 0 : index
    %c0_10 = arith.constant 0 : index
    %38 = vector.load %arg5[%c0_9, %c0_10] : memref<8x1xf32, #tpu.memory_space<vmem>>, vector<8x1xf32>
    tpu.vector_store %arg5[%c0_9, %c0_10], %31 {strides = array<i32>} : memref<8x1xf32, #tpu.memory_space<vmem>>, vector<8x1xf32>,
    %39 = vector.broadcast %37 : vector<1x1xf32> to vector<8x40xf32>
    %40 = arith.divf %0, %39 : vector<8x40xf32>
    %c0_11 = arith.constant 0 : index
    %c0_12 = arith.constant 0 : index
    %c0_13 = arith.constant 0 : index
    %41 = vector.load %arg1[%c0_11, %c0_12, %c0_13] : memref<2x4x512xf32, #tpu.memory_space<vmem>>, vector<2x4x384xf32>
    %c0_14 = arith.constant 0 : index
    %c0_15 = arith.constant 0 : index
    %c1 = arith.constant 1 : index
    %42 = vector.load %arg1[%c0_14, %c0_15, %c1] : memref<2x4x512xf32, #tpu.memory_space<vmem>>, vector<2x4x384xf32>
    %c0_16 = arith.constant 0 : index
    %c0_17 = arith.constant 0 : index
    %c2 = arith.constant 2 : index
    %43 = vector.load %arg1[%c0_16, %c0_17, %c2] : memref<2x4x512xf32, #tpu.memory_space<vmem>>, vector<2x4x384xf32>
    %c0_18 = arith.constant 0 : index
    %c0_19 = arith.constant 0 : index
    %c18 = arith.constant 18 : index
    %44 = vector.load %arg1[%c0_18, %c0_19, %c18] : memref<2x4x512xf32, #tpu.memory_space<vmem>>, vector<2x4x384xf32>
    %c0_20 = arith.constant 0 : index
    %c0_21 = arith.constant 0 : index
    %c19 = arith.constant 19 : index
    %45 = vector.load %arg1[%c0_20, %c0_21, %c19] : memref<2x4x512xf32, #tpu.memory_space<vmem>>, vector<2x4x384xf32>
    %c0_22 = arith.constant 0 : index
    %c0_23 = arith.constant 0 : index
    %c20 = arith.constant 20 : index
    %46 = vector.load %arg1[%c0_22, %c0_23, %c20] : memref<2x4x512xf32, #tpu.memory_space<vmem>>, vector<2x4x384xf32>
    %c0_24 = arith.constant 0 : index
    %c0_25 = arith.constant 0 : index
    %c36 = arith.constant 36 : index
    %47 = vector.load %arg1[%c0_24, %c0_25, %c36] : memref<2x4x512xf32, #tpu.memory_space<vmem>>, vector<2x4x384xf32>
    %c0_26 = arith.constant 0 : index
    %c0_27 = arith.constant 0 : index
    %c37 = arith.constant 37 : index
    %48 = vector.load %arg1[%c0_26, %c0_27, %c37] : memref<2x4x512xf32, #tpu.memory_space<vmem>>, vector<2x4x384xf32>
    %c0_28 = arith.constant 0 : index
    %c0_29 = arith.constant 0 : index
    %c38 = arith.constant 38 : index
    %49 = vector.load %arg1[%c0_28, %c0_29, %c38] : memref<2x4x512xf32, #tpu.memory_space<vmem>>, vector<2x4x384xf32>
    %cst_30 = arith.constant 0.000000e+00 : f32
    %50 = vector.broadcast %cst_30 : f32 to vector<2x4x384xf32>
    %51 = tpu.concatenate %41, %42, %43, %44, %45, %46, %47, %48, %49, %50 in 1 : vector<2x4x384xf32>, vector<2x4x384xf32>, vector<2x4x384xf32>, vector<2x4x384xf32>, vector<2x4x384xf32>, vector<2x4x384xf32>, vector<2x4x384xf32>, vector<2x4x384xf32>, vector<2x4x384xf32>, vector<2x4x384xf32> -> vector<2x40x384xf32>
    %c0_31 = arith.constant 0 : index
    %c0_32 = arith.constant 0 : index
    %52 = vector.load %arg3[%c0_31, %c0_32] : memref<8x1xf32, #tpu.memory_space<vmem>>, vector<8x1xf32>
    %53 = vector.shape_cast %52 : vector<8x1xf32> to vector<8x1xf32>
    %54 = vector.broadcast %53 : vector<8x1xf32> to vector<8x384xf32>
    %55 = vector.extract_strided_slice %51 {offsets = [0, 0, 0], sizes = [1, 40, 384], strides = [1, 1, 1]} : vector<2x40x384xf32> to vector<1x40x384xf32>
    %56 = vector.shape_cast %55 : vector<1x40x384xf32> to vector<40x384xf32>
    %cst_33 = arith.constant dense<0.000000e+00> : vector<8x384xf32>
    %57 = tpu.matmul %40, %56, %cst_33 {dimension_numbers = #tpu.dot_dimension_numbers<[1], [0], [0], [1], [0, 0, 1, 1], [], []>} : vector<8x40xf32>, vector<40x384xf32>, vector<8x384xf32> -> vector<8x384xf32>
    %58 = arith.addf %57, %54 : vector<8x384xf32>
    %cst_34 = arith.constant 2.000000e-01 : f32
    %59 = vector.broadcast %cst_34 : f32 to vector<8x384xf32>
    %60 = arith.mulf %59, %58 : vector<8x384xf32>
    %61 = arith.maximumf %58, %60 : vector<8x384xf32>
    %c0_35 = arith.constant 0 : index
    %c0_36 = arith.constant 0 : index
    %c0_37 = arith.constant 0 : index
    %62 = vector.load %arg4[%c0_35, %c0_36, %c0_37] : memref<2x8x384xf32, #tpu.memory_space<vmem>>, vector<1x8x384xf32>
    %63 = vector.shape_cast %62 : vector<1x8x384xf32> to vector<8x384xf32>
    %64 = vector.shape_cast %61 : vector<8x384xf32> to vector<1x8x384xf32>
    tpu.vector_store %arg4[%c0_35, %c0_36, %c0_37], %64 {strides = array<i32>} : memref<2x8x384xf32, #tpu.memory_space<vmem>>, vector<1x8x384xf32>,
    %65 = vector.extract_strided_slice %51 {offsets = [1, 0, 0], sizes = [1, 40, 384], strides = [1, 1, 1]} : vector<2x40x384xf32> to vector<1x40x384xf32>
    %66 = vector.shape_cast %65 : vector<1x40x384xf32> to vector<40x384xf32>
    %cst_38 = arith.constant dense<0.000000e+00> : vector<8x384xf32>
    %67 = tpu.matmul %40, %66, %cst_38 {dimension_numbers = #tpu.dot_dimension_numbers<[1], [0], [0], [1], [0, 0, 1, 1], [], []>} : vector<8x40xf32>, vector<40x384xf32>, vector<8x384xf32> -> vector<8x384xf32>
    %68 = arith.addf %67, %54 : vector<8x384xf32>
    %cst_39 = arith.constant 2.000000e-01 : f32
    %69 = vector.broadcast %cst_39 : f32 to vector<8x384xf32>
    %70 = arith.mulf %69, %68 : vector<8x384xf32>
    %71 = arith.maximumf %68, %70 : vector<8x384xf32>
    %c1_40 = arith.constant 1 : index
    %c0_41 = arith.constant 0 : index
    %c0_42 = arith.constant 0 : index
    %72 = vector.load %arg4[%c1_40, %c0_41, %c0_42] : memref<2x8x384xf32, #tpu.memory_space<vmem>>, vector<1x8x384xf32>
    %73 = vector.shape_cast %72 : vector<1x8x384xf32> to vector<8x384xf32>
    %74 = vector.shape_cast %71 : vector<8x384xf32> to vector<1x8x384xf32>
    tpu.vector_store %arg4[%c1_40, %c0_41, %c0_42], %74 {strides = array<i32>} : memref<2x8x384xf32, #tpu.memory_space<vmem>>, vector<1x8x384xf32>,
    return
  }
}

</mosaic_0001>

<llo_original>
// kernel: sn_conv_with_activation.1
$region0: #{sn_conv_with_activation.1}
  #allocation0 [shape = 'u32[]', space=smem, size = 0x4, offset = 0x4, fixed_abs, tag = 'smem constant byte address 0x4 - core index']
  #allocation1 [shape = 'u32[72,128]{1,0:T(1,128)}', space=vmem, size = 0x9000, scoped, tag = 'internal scratch']
  %s0 = inlined_call_operand.vmem [shape: f32[8,1], index: 0, kind: input, shape index: {}]
  %s1 = inlined_call_operand.vmem [shape: f32[2,4,512], index: 1, kind: input, shape index: {}]
  %s2 = inlined_call_operand.vmem [shape: f32[8,40], index: 2, kind: input, shape index: {}]
  %s3 = inlined_call_operand.vmem [shape: f32[8,1], index: 3, kind: input, shape index: {}]
  %s4 = inlined_call_operand.vmem [shape: f32[2,8,384], index: 4, kind: output, shape index: {0}]
  %s5 = inlined_call_operand.vmem [shape: f32[8,1], index: 5, kind: output, shape index: {1}]
  %6 = xla_tuple %s4, %s5
  %s7 = sld [smem:[#allocation0]]
  $region34: #{sn_conv_with_activation.1} parent=0
    _
  %s9 = ssub.s32 1, %s7
  %s10 = scalar_select 0, %s9, %s7
  // Predicated region
  $region2: #{sn_conv_with_activation.1} parent=0 // pred_check
    _
  $region3: #{sn_conv_with_activation.1} parent=0 // pred_check_branch
    %12 = sbr.rel (0) target = $region5
  $region4: #{sn_conv_with_activation.1} parent=0 // pred_region
    _
  $region5: #{sn_conv_with_activation.1} parent=0 // pred_fallthru
    _
  // Predicated region
  $region6: #{sn_conv_with_activation.1} parent=0 // pred_check
    _
  $region7: #{sn_conv_with_activation.1} parent=0 // pred_check_branch
    %14 = sbr.rel (0) target = $region9
  $region8: #{sn_conv_with_activation.1} parent=0 // pred_region
    _
  $region9: #{sn_conv_with_activation.1} parent=0 // pred_fallthru
    _
  // Predicated region
  $region10: #{sn_conv_with_activation.1} parent=0 // pred_check
    _
  $region11: #{sn_conv_with_activation.1} parent=0 // pred_check_branch
    %16 = sbr.rel (0) target = $region13
  $region12: #{sn_conv_with_activation.1} parent=0 // pred_region
    _
  $region13: #{sn_conv_with_activation.1} parent=0 // pred_fallthru
    _
  // Predicated region
  $region14: #{sn_conv_with_activation.1} parent=0 // pred_check
    _
  $region15: #{sn_conv_with_activation.1} parent=0 // pred_check_branch
    %18 = sbr.rel (0) target = $region17
  $region16: #{sn_conv_with_activation.1} parent=0 // pred_region
    _
  $region17: #{sn_conv_with_activation.1} parent=0 // pred_fallthru
    _
  %v19 = vld [vmem:[%s2] sm:$0xff]
  %v20 = vld [vmem:[%s0] sm:$0xff]
  %22 = vset.pattern.permute.xlu0 0
  %23 = vperm.xlu0 %22, %v20
  %v24 = vpop.permute.xlu0 %23
  %v26 = vmul.f32 %v19, %v24
  %vm27 = vcmask 326656
  %v28 = vsel %vm27, %v26, 0.0
  %v29 = vrot.slane %v28, 4
  %v30 = vadd.f32 %v28, %v29
  %v31 = vrot.slane %v30, 2
  %v32 = vadd.f32 %v30, %v31
  %v33 = vrot.slane %v32, 1
  %v34 = vadd.f32 %v32, %v33
  %v35 = vmul.f32 %v34, %v34
  %vm36 = vcmask 319488
  %v37 = vsel %vm36, %v35, 0.0
  %38 = vadd.xlane.f32.xlu0 %v37
  %v39 = vpop.xlane.xlu0 %38
  %v40 = vrot.slane %v39, 4
  %v41 = vadd.f32 %v39, %v40
  %v42 = vrot.slane %v41, 2
  %v43 = vadd.f32 %v41, %v42
  %v44 = vrot.slane %v43, 1
  %v45 = vadd.f32 %v43, %v44
  %s46 = vtos %v45
  %v47 = vstv %s46
  %v48 = vrsqrt.pop %v47
  %v49 = vmul.f32 %v48, %v47
  %v50 = vmul.f32 %v49, %v48
  %v51 = vmul.f32 0.5, %v50
  %v52 = vsub.f32 1.5, %v51
  %v53 = vmul.f32 %v48, %v52
  %v54 = vmul.f32 %v47, %v53
  %vm55 = vcmp.eq.f32.partialorder %v47, inf
  %v56 = vsel %vm55, %v47, %v54
  %vm57 = vcmp.eq.f32.partialorder %v47, 0.0
  %v58 = vand.u32 %v47, 2147483648
  %v59 = vsel %vm57, %v58, %v56
  %v60 = vmax.f32 %v59, 1e-12
  %v61 = vrcp.pop %v60
  %v62 = vmul.f32 %v60, %v61
  %v63 = vsub.f32 1.0, %v62
  %v64 = vmul.f32 %v61, %v63
  %v65 = vadd.f32 %v61, %v64
  %vm66 = vweird.f32 %v60
  %vm67 = vweird.f32 %v61
  %vm68 = vmor %vm66, %vm67
  %v69 = vsel %vm68, %v61, %v65
  %v70 = vand.u32 2147483647, %v60
  %vm71 = vcmp.eq.f32.partialorder %v70, 8.507059e+37
  %v72 = vand.u32 %v60, 2147483648
  %v73 = vor.u32 1.1754944e-38, %v72
  %v74 = vsel %vm71, %v73, %v69
  %v75 = vmul.f32 %v34, %v74
  %v76 = vmul.f32 %v19, %v75
  %v77 = vsel %vm27, %v76, 0.0
  %78 = vadd.xlane.f32.xlu0 %v77
  %v79 = vpop.xlane.xlu0 %78
  %v80 = vmul.f32 %v79, %v79
  %vm81 = vcmask 7168
  %v82 = vsel %vm81, %v80, 0.0
  %83 = vadd.xlane.f32.xlu0 %v82
  %v84 = vpop.xlane.xlu0 %83
  %v85 = vrot.slane %v84, 4
  %v86 = vadd.f32 %v84, %v85
  %v87 = vrot.slane %v86, 2
  %v88 = vadd.f32 %v86, %v87
  %v89 = vrot.slane %v88, 1
  %v90 = vadd.f32 %v88, %v89
  %s91 = vtos %v90
  %v92 = vstv %s91
  %v93 = vrsqrt.pop %v92
  %v94 = vmul.f32 %v93, %v92
  %v95 = vmul.f32 %v94, %v93
  %v96 = vmul.f32 0.5, %v95
  %v97 = vsub.f32 1.5, %v96
  %v98 = vmul.f32 %v93, %v97
  %v99 = vmul.f32 %v92, %v98
  %vm100 = vcmp.eq.f32.partialorder %v92, inf
  %v101 = vsel %vm100, %v92, %v99
  %vm102 = vcmp.eq.f32.partialorder %v92, 0.0
  %v103 = vand.u32 %v92, 2147483648
  %v104 = vsel %vm102, %v103, %v101
  %v105 = vmax.f32 %v104, 1e-12
  %v106 = vrcp.pop %v105
  %v107 = vmul.f32 %v105, %v106
  %v108 = vsub.f32 1.0, %v107
  %v109 = vmul.f32 %v106, %v108
  %v110 = vadd.f32 %v106, %v109
  %vm111 = vweird.f32 %v105
  %vm112 = vweird.f32 %v106
  %vm113 = vmor %vm111, %vm112
  %v114 = vsel %vm113, %v106, %v110
  %v115 = vand.u32 2147483647, %v105
  %vm116 = vcmp.eq.f32.partialorder %v115, 8.507059e+37
  %v117 = vand.u32 %v105, 2147483648
  %v118 = vor.u32 1.1754944e-38, %v117
  %v119 = vsel %vm116, %v118, %v114
  %v120 = vmul.f32 %v79, %v119
  %v121 = vmul.f32 %v120, %v79
  %v122 = vsel %vm81, %v121, 0.0
  %123 = vadd.xlane.f32.xlu0 %v122
  %v124 = vpop.xlane.xlu0 %123
  %v125 = vrot.slane %v124, 4
  %v126 = vadd.f32 %v124, %v125
  %v127 = vrot.slane %v126, 2
  %v128 = vadd.f32 %v126, %v127
  %v129 = vrot.slane %v128, 1
  %v130 = vadd.f32 %v128, %v129
  %s131 = vtos %v130
  %132 = vst.msk [vmem:[%s5] sm:$0xff] %vm81, %v120
  %v133 = vstv %s131
  %v134 = vrcp.pop %v133
  %v135 = vmul.f32 %v133, %v134
  %v136 = vsub.f32 1.0, %v135
  %v137 = vmul.f32 %v134, %v136
  %v138 = vadd.f32 %v134, %v137
  %vm139 = vweird.f32 %v133
  %vm140 = vweird.f32 %v134
  %vm141 = vmor %vm139, %vm140
  %v142 = vsel %vm141, %v134, %v138
  %v143 = vand.u32 2147483647, %v133
  %vm144 = vcmp.eq.f32.partialorder %v143, 8.507059e+37
  %v145 = vand.u32 %v133, 2147483648
  %v146 = vor.u32 1.1754944e-38, %v145
  %v147 = vsel %vm144, %v146, %v142
  %v148 = vmul.f32 %v19, %v147
  %v149 = vld [vmem:[%s1] sm:$0xff]
  %v150 = vld [vmem:[%s1 + $0x8] sm:$0xf]
  %v151 = vld [vmem:[%s1 + $0x10] sm:$0xff]
  %v152 = vld [vmem:[%s1 + $0x18] sm:$0xf]
  %v153 = vld [vmem:[%s1] sm:$0xff]
  %v154 = vld [vmem:[%s1 + $0x8] sm:$0xff]
  %v155 = vld [vmem:[%s1 + $0x10] sm:$0xff]
  %v156 = vld [vmem:[%s1 + $0x18] sm:$0xff]
  %161 = vst [vmem:[#allocation1] ss:$2 sm:$0xff] %v149
  %s162 = scalar_lea.vmem [#allocation1], 16
  %163 = vst [vmem:[%s162] ss:$2 sm:$0xff] %v150
  %v164 = vld.sshfl [vmem:[#allocation1] sm:$0xff pattern:$0x75316420]
  %v165 = vld.sshfl [vmem:[#allocation1 + $0x8] sm:$0xff pattern:$0x75316420]
  %v166 = vld.sshfl [vmem:[#allocation1 + $0x10] sm:$0xff pattern:$0x75316420]
  %s167 = scalar_lea.vmem [#allocation1], 32
  %168 = vst [vmem:[%s167] ss:$2 sm:$0xff] %v151
  %s169 = scalar_lea.vmem [#allocation1], 48
  %170 = vst [vmem:[%s169] ss:$2 sm:$0xff] %v152
  %v171 = vld.sshfl [vmem:[#allocation1 + $0x20] sm:$0xff pattern:$0x75316420]
  %v172 = vld.sshfl [vmem:[#allocation1 + $0x28] sm:$0xff pattern:$0x75316420]
  %v173 = vld.sshfl [vmem:[#allocation1 + $0x30] sm:$0xff pattern:$0x75316420]
  %s184 = scalar_lea.vmem [#allocation1], 1
  %185 = vst [vmem:[%s184] ss:$2 sm:$0xff] %v153
  %s186 = scalar_lea.vmem [#allocation1], 17
  %187 = vst [vmem:[%s186] ss:$2 sm:$0xff] %v154
  %v188 = vld.sshfl [vmem:[#allocation1] sm:$0xff pattern:$0x75316420]
  %v189 = vld.sshfl [vmem:[#allocation1 + $0x8] sm:$0xff pattern:$0x75316420]
  %v190 = vld.sshfl [vmem:[#allocation1 + $0x10] sm:$0xff pattern:$0x75316420]
  %v191 = vld.sshfl [vmem:[#allocation1 + $0x18] sm:$0xff pattern:$0x75316420]
  %s192 = scalar_lea.vmem [#allocation1], 33
  %193 = vst [vmem:[%s192] ss:$2 sm:$0xff] %v155
  %s194 = scalar_lea.vmem [#allocation1], 49
  %195 = vst [vmem:[%s194] ss:$2 sm:$0xff] %v156
  %v196 = vld.sshfl [vmem:[#allocation1 + $0x20] sm:$0xff pattern:$0x75316420]
  %v197 = vld.sshfl [vmem:[#allocation1 + $0x28] sm:$0xff pattern:$0x75316420]
  %v198 = vld.sshfl [vmem:[#allocation1 + $0x30] sm:$0xff pattern:$0x75316420]
  %v199 = vld.sshfl [vmem:[#allocation1 + $0x38] sm:$0xff pattern:$0x75316420]
  %200 = vrot.lane.b32.xlu0 %v188, 127
  %v201 = vpop.permute.xlu0 %200
  %202 = vrot.lane.b32.xlu0 %v189, 127
  %v203 = vpop.permute.xlu0 %202
  %204 = vrot.lane.b32.xlu0 %v190, 127
  %v205 = vpop.permute.xlu0 %204
  %206 = vrot.lane.b32.xlu0 %v191, 127
  %v207 = vpop.permute.xlu0 %206
  %208 = vrot.lane.b32.xlu0 %v196, 127
  %v209 = vpop.permute.xlu0 %208
  %210 = vrot.lane.b32.xlu0 %v197, 127
  %v211 = vpop.permute.xlu0 %210
  %212 = vrot.lane.b32.xlu0 %v198, 127
  %v213 = vpop.permute.xlu0 %212
  %214 = vrot.lane.b32.xlu0 %v199, 127
  %v215 = vpop.permute.xlu0 %214
  %vm216 = vcmask 1039360
  %v217 = vsel %vm216, %v201, %v203
  %v218 = vsel %vm216, %v203, %v205
  %v219 = vsel %vm216, %v205, %v207
  %v220 = vsel %vm216, %v209, %v211
  %v221 = vsel %vm216, %v211, %v213
  %v222 = vsel %vm216, %v213, %v215
  %229 = vst [vmem:[#allocation1] ss:$2 sm:$0xff] %v153
  %s230 = scalar_lea.vmem [#allocation1], 16
  %231 = vst [vmem:[%s230] ss:$2 sm:$0xff] %v154
  %v232 = vld.sshfl [vmem:[#allocation1] sm:$0xff pattern:$0x75316420]
  %v233 = vld.sshfl [vmem:[#allocation1 + $0x8] sm:$0xff pattern:$0x75316420]
  %v234 = vld.sshfl [vmem:[#allocation1 + $0x10] sm:$0xff pattern:$0x75316420]
  %v235 = vld.sshfl [vmem:[#allocation1 + $0x18] sm:$0xff pattern:$0x75316420]
  %s236 = scalar_lea.vmem [#allocation1], 32
  %237 = vst [vmem:[%s236] ss:$2 sm:$0xff] %v155
  %s238 = scalar_lea.vmem [#allocation1], 48
  %239 = vst [vmem:[%s238] ss:$2 sm:$0xff] %v156
  %v240 = vld.sshfl [vmem:[#allocation1 + $0x20] sm:$0xff pattern:$0x75316420]
  %v241 = vld.sshfl [vmem:[#allocation1 + $0x28] sm:$0xff pattern:$0x75316420]
  %v242 = vld.sshfl [vmem:[#allocation1 + $0x30] sm:$0xff pattern:$0x75316420]
  %v243 = vld.sshfl [vmem:[#allocation1 + $0x38] sm:$0xff pattern:$0x75316420]
  %244 = vrot.lane.b32.xlu0 %v232, 126
  %v245 = vpop.permute.xlu0 %244
  %246 = vrot.lane.b32.xlu0 %v233, 126
  %v247 = vpop.permute.xlu0 %246
  %248 = vrot.lane.b32.xlu0 %v234, 126
  %v249 = vpop.permute.xlu0 %248
  %250 = vrot.lane.b32.xlu0 %v235, 126
  %v251 = vpop.permute.xlu0 %250
  %252 = vrot.lane.b32.xlu0 %v240, 126
  %v253 = vpop.permute.xlu0 %252
  %254 = vrot.lane.b32.xlu0 %v241, 126
  %v255 = vpop.permute.xlu0 %254
  %256 = vrot.lane.b32.xlu0 %v242, 126
  %v257 = vpop.permute.xlu0 %256
  %258 = vrot.lane.b32.xlu0 %v243, 126
  %v259 = vpop.permute.xlu0 %258
  %vm260 = vcmask 1031168
  %v261 = vsel %vm260, %v245, %v247
  %v262 = vsel %vm260, %v247, %v249
  %v263 = vsel %vm260, %v249, %v251
  %v264 = vsel %vm260, %v253, %v255
  %v265 = vsel %vm260, %v255, %v257
  %v266 = vsel %vm260, %v257, %v259
  %s273 = scalar_lea.vmem [#allocation1], 1
  %274 = vst [vmem:[%s273] ss:$2 sm:$0xff] %v153
  %s275 = scalar_lea.vmem [#allocation1], 17
  %276 = vst [vmem:[%s275] ss:$2 sm:$0xff] %v154
  %v277 = vld.sshfl [vmem:[#allocation1] sm:$0xff pattern:$0x75316420]
  %v278 = vld.sshfl [vmem:[#allocation1 + $0x8] sm:$0xff pattern:$0x75316420]
  %v279 = vld.sshfl [vmem:[#allocation1 + $0x10] sm:$0xff pattern:$0x75316420]
  %v280 = vld.sshfl [vmem:[#allocation1 + $0x18] sm:$0xff pattern:$0x75316420]
  %s281 = scalar_lea.vmem [#allocation1], 33
  %282 = vst [vmem:[%s281] ss:$2 sm:$0xff] %v155
  %s283 = scalar_lea.vmem [#allocation1], 49
  %284 = vst [vmem:[%s283] ss:$2 sm:$0xff] %v156
  %v285 = vld.sshfl [vmem:[#allocation1 + $0x20] sm:$0xff pattern:$0x75316420]
  %v286 = vld.sshfl [vmem:[#allocation1 + $0x28] sm:$0xff pattern:$0x75316420]
  %v287 = vld.sshfl [vmem:[#allocation1 + $0x30] sm:$0xff pattern:$0x75316420]
  %v288 = vld.sshfl [vmem:[#allocation1 + $0x38] sm:$0xff pattern:$0x75316420]
  %289 = vrot.lane.b32.xlu0 %v277, 110
  %v290 = vpop.permute.xlu0 %289
  %291 = vrot.lane.b32.xlu0 %v278, 110
  %v292 = vpop.permute.xlu0 %291
  %293 = vrot.lane.b32.xlu0 %v279, 110
  %v294 = vpop.permute.xlu0 %293
  %295 = vrot.lane.b32.xlu0 %v280, 110
  %v296 = vpop.permute.xlu0 %295
  %297 = vrot.lane.b32.xlu0 %v285, 110
  %v298 = vpop.permute.xlu0 %297
  %299 = vrot.lane.b32.xlu0 %v286, 110
  %v300 = vpop.permute.xlu0 %299
  %301 = vrot.lane.b32.xlu0 %v287, 110
  %v302 = vpop.permute.xlu0 %301
  %303 = vrot.lane.b32.xlu0 %v288, 110
  %v304 = vpop.permute.xlu0 %303
  %vm305 = vcmask 900096
  %v306 = vsel %vm305, %v290, %v292
  %v307 = vsel %vm305, %v292, %v294
  %v308 = vsel %vm305, %v294, %v296
  %v309 = vsel %vm305, %v298, %v300
  %v310 = vsel %vm305, %v300, %v302
  %v311 = vsel %vm305, %v302, %v304
  %318 = vst [vmem:[#allocation1] ss:$2 sm:$0xff] %v153
  %s319 = scalar_lea.vmem [#allocation1], 16
  %320 = vst [vmem:[%s319] ss:$2 sm:$0xff] %v154
  %v321 = vld.sshfl [vmem:[#allocation1] sm:$0xff pattern:$0x75316420]
  %v322 = vld.sshfl [vmem:[#allocation1 + $0x8] sm:$0xff pattern:$0x75316420]
  %v323 = vld.sshfl [vmem:[#allocation1 + $0x10] sm:$0xff pattern:$0x75316420]
  %v324 = vld.sshfl [vmem:[#allocation1 + $0x18] sm:$0xff pattern:$0x75316420]
  %s325 = scalar_lea.vmem [#allocation1], 32
  %326 = vst [vmem:[%s325] ss:$2 sm:$0xff] %v155
  %s327 = scalar_lea.vmem [#allocation1], 48
  %328 = vst [vmem:[%s327] ss:$2 sm:$0xff] %v156
  %v329 = vld.sshfl [vmem:[#allocation1 + $0x20] sm:$0xff pattern:$0x75316420]
  %v330 = vld.sshfl [vmem:[#allocation1 + $0x28] sm:$0xff pattern:$0x75316420]
  %v331 = vld.sshfl [vmem:[#allocation1 + $0x30] sm:$0xff pattern:$0x75316420]
  %v332 = vld.sshfl [vmem:[#allocation1 + $0x38] sm:$0xff pattern:$0x75316420]
  %333 = vrot.lane.b32.xlu0 %v321, 109
  %v334 = vpop.permute.xlu0 %333
  %335 = vrot.lane.b32.xlu0 %v322, 109
  %v336 = vpop.permute.xlu0 %335
  %337 = vrot.lane.b32.xlu0 %v323, 109
  %v338 = vpop.permute.xlu0 %337
  %339 = vrot.lane.b32.xlu0 %v324, 109
  %v340 = vpop.permute.xlu0 %339
  %341 = vrot.lane.b32.xlu0 %v329, 109
  %v342 = vpop.permute.xlu0 %341
  %343 = vrot.lane.b32.xlu0 %v330, 109
  %v344 = vpop.permute.xlu0 %343
  %345 = vrot.lane.b32.xlu0 %v331, 109
  %v346 = vpop.permute.xlu0 %345
  %347 = vrot.lane.b32.xlu0 %v332, 109
  %v348 = vpop.permute.xlu0 %347
  %vm349 = vcmask 891904
  %v350 = vsel %vm349, %v334, %v336
  %v351 = vsel %vm349, %v336, %v338
  %v352 = vsel %vm349, %v338, %v340
  %v353 = vsel %vm349, %v342, %v344
  %v354 = vsel %vm349, %v344, %v346
  %v355 = vsel %vm349, %v346, %v348
  %s362 = scalar_lea.vmem [#allocation1], 1
  %363 = vst [vmem:[%s362] ss:$2 sm:$0xff] %v153
  %s364 = scalar_lea.vmem [#allocation1], 17
  %365 = vst [vmem:[%s364] ss:$2 sm:$0xff] %v154
  %v366 = vld.sshfl [vmem:[#allocation1] sm:$0xff pattern:$0x75316420]
  %v367 = vld.sshfl [vmem:[#allocation1 + $0x8] sm:$0xff pattern:$0x75316420]
  %v368 = vld.sshfl [vmem:[#allocation1 + $0x10] sm:$0xff pattern:$0x75316420]
  %v369 = vld.sshfl [vmem:[#allocation1 + $0x18] sm:$0xff pattern:$0x75316420]
  %s370 = scalar_lea.vmem [#allocation1], 33
  %371 = vst [vmem:[%s370] ss:$2 sm:$0xff] %v155
  %s372 = scalar_lea.vmem [#allocation1], 49
  %373 = vst [vmem:[%s372] ss:$2 sm:$0xff] %v156
  %v374 = vld.sshfl [vmem:[#allocation1 + $0x20] sm:$0xff pattern:$0x75316420]
  %v375 = vld.sshfl [vmem:[#allocation1 + $0x28] sm:$0xff pattern:$0x75316420]
  %v376 = vld.sshfl [vmem:[#allocation1 + $0x30] sm:$0xff pattern:$0x75316420]
  %v377 = vld.sshfl [vmem:[#allocation1 + $0x38] sm:$0xff pattern:$0x75316420]
  %378 = vrot.lane.b32.xlu0 %v366, 108
  %v379 = vpop.permute.xlu0 %378
  %380 = vrot.lane.b32.xlu0 %v367, 108
  %v381 = vpop.permute.xlu0 %380
  %382 = vrot.lane.b32.xlu0 %v368, 108
  %v383 = vpop.permute.xlu0 %382
  %384 = vrot.lane.b32.xlu0 %v369, 108
  %v385 = vpop.permute.xlu0 %384
  %386 = vrot.lane.b32.xlu0 %v374, 108
  %v387 = vpop.permute.xlu0 %386
  %388 = vrot.lane.b32.xlu0 %v375, 108
  %v389 = vpop.permute.xlu0 %388
  %390 = vrot.lane.b32.xlu0 %v376, 108
  %v391 = vpop.permute.xlu0 %390
  %392 = vrot.lane.b32.xlu0 %v377, 108
  %v393 = vpop.permute.xlu0 %392
  %vm394 = vcmask 883712
  %v395 = vsel %vm394, %v379, %v381
  %v396 = vsel %vm394, %v381, %v383
  %v397 = vsel %vm394, %v383, %v385
  %v398 = vsel %vm394, %v387, %v389
  %v399 = vsel %vm394, %v389, %v391
  %v400 = vsel %vm394, %v391, %v393
  %407 = vst [vmem:[#allocation1] ss:$2 sm:$0xff] %v153
  %s408 = scalar_lea.vmem [#allocation1], 16
  %409 = vst [vmem:[%s408] ss:$2 sm:$0xff] %v154
  %v410 = vld.sshfl [vmem:[#allocation1] sm:$0xff pattern:$0x75316420]
  %v411 = vld.sshfl [vmem:[#allocation1 + $0x8] sm:$0xff pattern:$0x75316420]
  %v412 = vld.sshfl [vmem:[#allocation1 + $0x10] sm:$0xff pattern:$0x75316420]
  %v413 = vld.sshfl [vmem:[#allocation1 + $0x18] sm:$0xff pattern:$0x75316420]
  %s414 = scalar_lea.vmem [#allocation1], 32
  %415 = vst [vmem:[%s414] ss:$2 sm:$0xff] %v155
  %s416 = scalar_lea.vmem [#allocation1], 48
  %417 = vst [vmem:[%s416] ss:$2 sm:$0xff] %v156
  %v418 = vld.sshfl [vmem:[#allocation1 + $0x20] sm:$0xff pattern:$0x75316420]
  %v419 = vld.sshfl [vmem:[#allocation1 + $0x28] sm:$0xff pattern:$0x75316420]
  %v420 = vld.sshfl [vmem:[#allocation1 + $0x30] sm:$0xff pattern:$0x75316420]
  %v421 = vld.sshfl [vmem:[#allocation1 + $0x38] sm:$0xff pattern:$0x75316420]
  %422 = vrot.lane.b32.xlu0 %v410, 92
  %v423 = vpop.permute.xlu0 %422
  %424 = vrot.lane.b32.xlu0 %v411, 92
  %v425 = vpop.permute.xlu0 %424
  %426 = vrot.lane.b32.xlu0 %v412, 92
  %v427 = vpop.permute.xlu0 %426
  %428 = vrot.lane.b32.xlu0 %v413, 92
  %v429 = vpop.permute.xlu0 %428
  %430 = vrot.lane.b32.xlu0 %v418, 92
  %v431 = vpop.permute.xlu0 %430
  %432 = vrot.lane.b32.xlu0 %v419, 92
  %v433 = vpop.permute.xlu0 %432
  %434 = vrot.lane.b32.xlu0 %v420, 92
  %v435 = vpop.permute.xlu0 %434
  %436 = vrot.lane.b32.xlu0 %v421, 92
  %v437 = vpop.permute.xlu0 %436
  %vm438 = vcmask 752640
  %v439 = vsel %vm438, %v423, %v425
  %v440 = vsel %vm438, %v425, %v427
  %v441 = vsel %vm438, %v427, %v429
  %v442 = vsel %vm438, %v431, %v433
  %v443 = vsel %vm438, %v433, %v435
  %v444 = vsel %vm438, %v435, %v437
  %s451 = scalar_lea.vmem [#allocation1], 1
  %452 = vst [vmem:[%s451] ss:$2 sm:$0xff] %v153
  %s453 = scalar_lea.vmem [#allocation1], 17
  %454 = vst [vmem:[%s453] ss:$2 sm:$0xff] %v154
  %v455 = vld.sshfl [vmem:[#allocation1] sm:$0xff pattern:$0x75316420]
  %v456 = vld.sshfl [vmem:[#allocation1 + $0x8] sm:$0xff pattern:$0x75316420]
  %v457 = vld.sshfl [vmem:[#allocation1 + $0x10] sm:$0xff pattern:$0x75316420]
  %v458 = vld.sshfl [vmem:[#allocation1 + $0x18] sm:$0xff pattern:$0x75316420]
  %s459 = scalar_lea.vmem [#allocation1], 33
  %460 = vst [vmem:[%s459] ss:$2 sm:$0xff] %v155
  %s461 = scalar_lea.vmem [#allocation1], 49
  %462 = vst [vmem:[%s461] ss:$2 sm:$0xff] %v156
  %v463 = vld.sshfl [vmem:[#allocation1 + $0x20] sm:$0xff pattern:$0x75316420]
  %v464 = vld.sshfl [vmem:[#allocation1 + $0x28] sm:$0xff pattern:$0x75316420]
  %v465 = vld.sshfl [vmem:[#allocation1 + $0x30] sm:$0xff pattern:$0x75316420]
  %v466 = vld.sshfl [vmem:[#allocation1 + $0x38] sm:$0xff pattern:$0x75316420]
  %467 = vrot.lane.b32.xlu0 %v455, 91
  %v468 = vpop.permute.xlu0 %467
  %469 = vrot.lane.b32.xlu0 %v456, 91
  %v470 = vpop.permute.xlu0 %469
  %471 = vrot.lane.b32.xlu0 %v457, 91
  %v472 = vpop.permute.xlu0 %471
  %473 = vrot.lane.b32.xlu0 %v458, 91
  %v474 = vpop.permute.xlu0 %473
  %475 = vrot.lane.b32.xlu0 %v463, 91
  %v476 = vpop.permute.xlu0 %475
  %477 = vrot.lane.b32.xlu0 %v464, 91
  %v478 = vpop.permute.xlu0 %477
  %479 = vrot.lane.b32.xlu0 %v465, 91
  %v480 = vpop.permute.xlu0 %479
  %481 = vrot.lane.b32.xlu0 %v466, 91
  %v482 = vpop.permute.xlu0 %481
  %vm483 = vcmask 744448
  %v484 = vsel %vm483, %v468, %v470
  %v485 = vsel %vm483, %v470, %v472
  %v486 = vsel %vm483, %v472, %v474
  %v487 = vsel %vm483, %v476, %v478
  %v488 = vsel %vm483, %v478, %v480
  %v489 = vsel %vm483, %v480, %v482
  %496 = vst [vmem:[#allocation1] ss:$2 sm:$0xff] %v153
  %s497 = scalar_lea.vmem [#allocation1], 16
  %498 = vst [vmem:[%s497] ss:$2 sm:$0xff] %v154
  %v499 = vld.sshfl [vmem:[#allocation1] sm:$0xff pattern:$0x75316420]
  %v500 = vld.sshfl [vmem:[#allocation1 + $0x8] sm:$0xff pattern:$0x75316420]
  %v501 = vld.sshfl [vmem:[#allocation1 + $0x10] sm:$0xff pattern:$0x75316420]
  %v502 = vld.sshfl [vmem:[#allocation1 + $0x18] sm:$0xff pattern:$0x75316420]
  %s503 = scalar_lea.vmem [#allocation1], 32
  %504 = vst [vmem:[%s503] ss:$2 sm:$0xff] %v155
  %s505 = scalar_lea.vmem [#allocation1], 48
  %506 = vst [vmem:[%s505] ss:$2 sm:$0xff] %v156
  %v507 = vld.sshfl [vmem:[#allocation1 + $0x20] sm:$0xff pattern:$0x75316420]
  %v508 = vld.sshfl [vmem:[#allocation1 + $0x28] sm:$0xff pattern:$0x75316420]
  %v509 = vld.sshfl [vmem:[#allocation1 + $0x30] sm:$0xff pattern:$0x75316420]
  %v510 = vld.sshfl [vmem:[#allocation1 + $0x38] sm:$0xff pattern:$0x75316420]
  %511 = vrot.lane.b32.xlu0 %v499, 90
  %v512 = vpop.permute.xlu0 %511
  %513 = vrot.lane.b32.xlu0 %v500, 90
  %v514 = vpop.permute.xlu0 %513
  %515 = vrot.lane.b32.xlu0 %v501, 90
  %v516 = vpop.permute.xlu0 %515
  %517 = vrot.lane.b32.xlu0 %v502, 90
  %v518 = vpop.permute.xlu0 %517
  %519 = vrot.lane.b32.xlu0 %v507, 90
  %v520 = vpop.permute.xlu0 %519
  %521 = vrot.lane.b32.xlu0 %v508, 90
  %v522 = vpop.permute.xlu0 %521
  %523 = vrot.lane.b32.xlu0 %v509, 90
  %v524 = vpop.permute.xlu0 %523
  %525 = vrot.lane.b32.xlu0 %v510, 90
  %v526 = vpop.permute.xlu0 %525
  %vm527 = vcmask 736256
  %v528 = vsel %vm527, %v512, %v514
  %v529 = vsel %vm527, %v514, %v516
  %v530 = vsel %vm527, %v516, %v518
  %v531 = vsel %vm527, %v520, %v522
  %v532 = vsel %vm527, %v522, %v524
  %v533 = vsel %vm527, %v524, %v526
  %vm540 = vcmask 1043456
  %v541 = vsel %vm540, %v164, %v217
  %v542 = vsel %vm540, %v165, %v218
  %v543 = vsel %vm540, %v166, %v219
  %v544 = vsel %vm540, %v171, %v220
  %v545 = vsel %vm540, %v172, %v221
  %v546 = vsel %vm540, %v173, %v222
  %v547 = vsel %vm540, %v261, %v306
  %v548 = vsel %vm540, %v262, %v307
  %v549 = vsel %vm540, %v263, %v308
  %v550 = vsel %vm540, %v264, %v309
  %v551 = vsel %vm540, %v265, %v310
  %v552 = vsel %vm540, %v266, %v311
  %v553 = vsel %vm540, %v350, %v395
  %v554 = vsel %vm540, %v351, %v396
  %v555 = vsel %vm540, %v352, %v397
  %v556 = vsel %vm540, %v353, %v398
  %v557 = vsel %vm540, %v354, %v399
  %v558 = vsel %vm540, %v355, %v400
  %v559 = vsel %vm540, %v439, %v484
  %v560 = vsel %vm540, %v440, %v485
  %v561 = vsel %vm540, %v441, %v486
  %v562 = vsel %vm540, %v442, %v487
  %v563 = vsel %vm540, %v443, %v488
  %v564 = vsel %vm540, %v444, %v489
  %v565 = vsel %vm540, %v528, 0.0
  %v566 = vsel %vm540, %v529, 0.0
  %v567 = vsel %vm540, %v530, 0.0
  %v568 = vsel %vm540, %v531, 0.0
  %v569 = vsel %vm540, %v532, 0.0
  %v570 = vsel %vm540, %v533, 0.0
  %v571 = vld [vmem:[%s3] sm:$0xff]
  %573 = vset.pattern.permute.xlu0 0
  %574 = vperm.xlu0 %573, %v571
  %v575 = vpop.permute.xlu0 %574
  %v578 = vsel %vm27, %v148, 0
  %580 = vmatpush.msra.mxu0 0.0
  %581 = vmatpush.msra.mxu0 0.0
  %582 = vmatpush.msra.mxu0 0.0
  %583 = vmatpush.msra.mxu0 0.0
  %584 = vmatpush.msra.mxu0 0.0
  %585 = vmatpush.msra.mxu0 0.0
  %586 = vmatpush.msra.mxu0 0.0
  %587 = vmatpush.msra.mxu0 0.0
  %588 = vmatpush.msra.mxu0 0.0
  %589 = vmatpush.msra.mxu0 0.0
  %590 = vmatpush.msra.mxu0 0.0
  %591 = vmatpush.msra.mxu0 %v565
  %592 = vmatpush.msra.mxu0 %v559
  %593 = vmatpush.msra.mxu0 %v553
  %594 = vmatpush.msra.mxu0 %v547
  %595 = vmatpush.msra.mxu0 %v541
  %596 = vmatmul.f32.gmra.mxu0 %v578
  %v597 = vpop.f32.mrf.mxu0
  %v598 = vadd.f32 %v575, %v597
  %599 = vdwg.mxu0
  %600 = vmatpush.msra.mxu0 0.0
  %601 = vmatpush.msra.mxu0 0.0
  %602 = vmatpush.msra.mxu0 0.0
  %603 = vmatpush.msra.mxu0 0.0
  %604 = vmatpush.msra.mxu0 0.0
  %605 = vmatpush.msra.mxu0 0.0
  %606 = vmatpush.msra.mxu0 0.0
  %607 = vmatpush.msra.mxu0 0.0
  %608 = vmatpush.msra.mxu0 0.0
  %609 = vmatpush.msra.mxu0 0.0
  %610 = vmatpush.msra.mxu0 0.0
  %611 = vmatpush.msra.mxu0 %v566
  %612 = vmatpush.msra.mxu0 %v560
  %613 = vmatpush.msra.mxu0 %v554
  %614 = vmatpush.msra.mxu0 %v548
  %615 = vmatpush.msra.mxu0 %v542
  %616 = vmatmul.f32.gmra.mxu0 %v578
  %v617 = vpop.f32.mrf.mxu0
  %v618 = vadd.f32 %v575, %v617
  %619 = vdwg.mxu0
  %620 = vmatpush.msra.mxu0 0.0
  %621 = vmatpush.msra.mxu0 0.0
  %622 = vmatpush.msra.mxu0 0.0
  %623 = vmatpush.msra.mxu0 0.0
  %624 = vmatpush.msra.mxu0 0.0
  %625 = vmatpush.msra.mxu0 0.0
  %626 = vmatpush.msra.mxu0 0.0
  %627 = vmatpush.msra.mxu0 0.0
  %628 = vmatpush.msra.mxu0 0.0
  %629 = vmatpush.msra.mxu0 0.0
  %630 = vmatpush.msra.mxu0 0.0
  %631 = vmatpush.msra.mxu0 %v567
  %632 = vmatpush.msra.mxu0 %v561
  %633 = vmatpush.msra.mxu0 %v555
  %634 = vmatpush.msra.mxu0 %v549
  %635 = vmatpush.msra.mxu0 %v543
  %636 = vmatmul.f32.gmra.mxu0 %v578
  %v637 = vpop.f32.mrf.mxu0
  %v638 = vadd.f32 %v575, %v637
  %639 = vdwg.mxu0
  %v640 = vmul.f32 %v598, 0.2
  %v641 = vmul.f32 %v618, 0.2
  %v642 = vmul.f32 %v638, 0.2
  %v643 = vmax.f32 %v598, %v640
  %v644 = vmax.f32 %v618, %v641
  %v645 = vmax.f32 %v638, %v642
  %646 = vst [vmem:[%s4] sm:$0xff] %v643
  %647 = vst [vmem:[%s4 + $0x8] sm:$0xff] %v644
  %648 = vst [vmem:[%s4 + $0x10] sm:$0xff] %v645
  %649 = vmatpush.msra.mxu0 0.0
  %650 = vmatpush.msra.mxu0 0.0
  %651 = vmatpush.msra.mxu0 0.0
  %652 = vmatpush.msra.mxu0 0.0
  %653 = vmatpush.msra.mxu0 0.0
  %654 = vmatpush.msra.mxu0 0.0
  %655 = vmatpush.msra.mxu0 0.0
  %656 = vmatpush.msra.mxu0 0.0
  %657 = vmatpush.msra.mxu0 0.0
  %658 = vmatpush.msra.mxu0 0.0
  %659 = vmatpush.msra.mxu0 0.0
  %660 = vmatpush.msra.mxu0 %v568
  %661 = vmatpush.msra.mxu0 %v562
  %662 = vmatpush.msra.mxu0 %v556
  %663 = vmatpush.msra.mxu0 %v550
  %664 = vmatpush.msra.mxu0 %v544
  %665 = vmatmul.f32.gmra.mxu0 %v578
  %v666 = vpop.f32.mrf.mxu0
  %v667 = vadd.f32 %v575, %v666
  %668 = vdwg.mxu0
  %669 = vmatpush.msra.mxu0 0.0
  %670 = vmatpush.msra.mxu0 0.0
  %671 = vmatpush.msra.mxu0 0.0
  %672 = vmatpush.msra.mxu0 0.0
  %673 = vmatpush.msra.mxu0 0.0
  %674 = vmatpush.msra.mxu0 0.0
  %675 = vmatpush.msra.mxu0 0.0
  %676 = vmatpush.msra.mxu0 0.0
  %677 = vmatpush.msra.mxu0 0.0
  %678 = vmatpush.msra.mxu0 0.0
  %679 = vmatpush.msra.mxu0 0.0
  %680 = vmatpush.msra.mxu0 %v569
  %681 = vmatpush.msra.mxu0 %v563
  %682 = vmatpush.msra.mxu0 %v557
  %683 = vmatpush.msra.mxu0 %v551
  %684 = vmatpush.msra.mxu0 %v545
  %685 = vmatmul.f32.gmra.mxu0 %v578
  %v686 = vpop.f32.mrf.mxu0
  %v687 = vadd.f32 %v575, %v686
  %688 = vdwg.mxu0
  %689 = vmatpush.msra.mxu0 0.0
  %690 = vmatpush.msra.mxu0 0.0
  %691 = vmatpush.msra.mxu0 0.0
  %692 = vmatpush.msra.mxu0 0.0
  %693 = vmatpush.msra.mxu0 0.0
  %694 = vmatpush.msra.mxu0 0.0
  %695 = vmatpush.msra.mxu0 0.0
  %696 = vmatpush.msra.mxu0 0.0
  %697 = vmatpush.msra.mxu0 0.0
  %698 = vmatpush.msra.mxu0 0.0
  %699 = vmatpush.msra.mxu0 0.0
  %700 = vmatpush.msra.mxu0 %v570
  %701 = vmatpush.msra.mxu0 %v564
  %702 = vmatpush.msra.mxu0 %v558
  %703 = vmatpush.msra.mxu0 %v552
  %704 = vmatpush.msra.mxu0 %v546
  %705 = vmatmul.f32.gmra.mxu0 %v578
  %v706 = vpop.f32.mrf.mxu0
  %v707 = vadd.f32 %v575, %v706
  %708 = vdwg.mxu0
  %v709 = vmul.f32 %v667, 0.2
  %v710 = vmul.f32 %v687, 0.2
  %v711 = vmul.f32 %v707, 0.2
  %v712 = vmax.f32 %v667, %v709
  %v713 = vmax.f32 %v687, %v710
  %v714 = vmax.f32 %v707, %v711
  %s715 = scalar_lea.vmem %s4, 24
  %716 = vst [vmem:[%s715] sm:$0xff] %v712
  %717 = vst [vmem:[%s715 + $0x8] sm:$0xff] %v713
  %718 = vst [vmem:[%s715 + $0x10] sm:$0xff] %v714
  // Predicated region
  $region18: #{sn_conv_with_activation.1} parent=0 // pred_check
    _
  $region19: #{sn_conv_with_activation.1} parent=0 // pred_check_branch
    %720 = sbr.rel (0) target = $region21
  $region20: #{sn_conv_with_activation.1} parent=0 // pred_region
    _
  $region21: #{sn_conv_with_activation.1} parent=0 // pred_fallthru
    _
  // Predicated region
  $region22: #{sn_conv_with_activation.1} parent=0 // pred_check
    _
  $region23: #{sn_conv_with_activation.1} parent=0 // pred_check_branch
    %722 = sbr.rel (0) target = $region25
  $region24: #{sn_conv_with_activation.1} parent=0 // pred_region
    _
  $region25: #{sn_conv_with_activation.1} parent=0 // pred_fallthru
    _
  // Predicated region
  $region26: #{sn_conv_with_activation.1} parent=0 // pred_check
    _
  $region27: #{sn_conv_with_activation.1} parent=0 // pred_check_branch
    %724 = sbr.rel (0) target = $region29
  $region28: #{sn_conv_with_activation.1} parent=0 // pred_region
    _
  $region29: #{sn_conv_with_activation.1} parent=0 // pred_fallthru
    _
  // Predicated region
  $region30: #{sn_conv_with_activation.1} parent=0 // pred_check
    _
  $region31: #{sn_conv_with_activation.1} parent=0 // pred_check_branch
    %726 = sbr.rel (0) target = $region33
  $region32: #{sn_conv_with_activation.1} parent=0 // pred_region
    _
  $region33: #{sn_conv_with_activation.1} parent=0 // pred_fallthru
    _

</llo_original>
